<compile_context>
chip_gen: v7x
topology: tpu7x:2x2x1
jax: 0.10.0
libtpu: 0.0.40
codegen_flags: <defaults>
</compile_context>

<pallas_src>
import math
import jax
import jax.numpy as jnp
from jax.experimental import pallas as pl
from jax.experimental.pallas import tpu as pltpu  # noqa: F401  (TPU backend)


def _round_up(x: int, m: int) -> int:
    return ((x + m - 1) // m) * m


def gcn_kernel(a_ref, x_ref, w1t_ref, b1_ref, w2t_ref, b2_ref, o_ref):
    # Layer 1 (reassociated): h = ReLU( A @ (X @ W1^T) + b1 )
    xw = jnp.dot(x_ref[...], w1t_ref[...], preferred_element_type=jnp.float32)
    h = jnp.dot(a_ref[...], xw, preferred_element_type=jnp.float32) + b1_ref[...]
    h = jnp.maximum(h, 0.0)
    # Layer 2 (reassociated): out = A @ (h @ W2^T) + b2
    hw = jnp.dot(h, w2t_ref[...], preferred_element_type=jnp.float32)
    out = jnp.dot(a_ref[...], hw, preferred_element_type=jnp.float32) + b2_ref[...]
    o_ref[...] = out.astype(o_ref.dtype)


def gcn_forward(A, X, W1, b1, W2, b2):
    N, F = X.shape
    H = W1.shape[0]          # 16
    C = W2.shape[0]          # num_class

    # Wrapper-side layout plumbing: pad lane dims to 128, sublane dims to 8,
    # and pre-transpose weights. Zero padding is exact: padded columns of W1^T
    # produce zero hidden channels (bias padded with 0, ReLU(0)=0) and the
    # matching padded rows of W2^T contribute nothing; padded rows/cols of A
    # are zero so phantom nodes never reach the real outputs.
    Np = _round_up(N, 8)
    Fp = _round_up(F, 128)
    Hp = _round_up(H, 128)
    Cp = _round_up(C, 128)

    A_p = jnp.zeros((Np, Np), A.dtype).at[:N, :N].set(A)
    X_p = jnp.zeros((Np, Fp), X.dtype).at[:N, :F].set(X)
    W1t = jnp.zeros((Fp, Hp), W1.dtype).at[:F, :H].set(W1.T)
    W2t = jnp.zeros((Hp, Cp), W2.dtype).at[:H, :C].set(W2.T)
    b1_p = jnp.zeros((1, Hp), b1.dtype).at[0, :H].set(b1)
    b2_p = jnp.zeros((1, Cp), b2.dtype).at[0, :C].set(b2)

    full = lambda shape: pl.BlockSpec(shape, lambda: tuple(0 for _ in shape))

    out_p = pl.pallas_call(
        gcn_kernel,
        out_shape=jax.ShapeDtypeStruct((Np, Cp), X.dtype),
        grid=(),
        in_specs=[
            full((Np, Np)),   # A   (padded)
            full((Np, Fp)),   # X   (padded)
            full((Fp, Hp)),   # W1^T (pre-transposed, padded)
            full((1, Hp)),    # b1  (lane-dense row)
            full((Hp, Cp)),   # W2^T (pre-transposed, padded)
            full((1, Cp)),    # b2  (lane-dense row)
        ],
        out_specs=full((Np, Cp)),
    )(A_p, X_p, W1t, b1_p, W2t, b2_p)

    return out_p[:N, :C]


def init_linear(key, in_features, out_features):
    # Deterministic init mimicking nn.Linear default (uniform +/- 1/sqrt(in)).
    kw, kb = jax.random.split(key)
    bound = 1.0 / math.sqrt(in_features)
    W = jax.random.uniform(kw, (out_features, in_features), jnp.float32, -bound, bound)
    b = jax.random.uniform(kb, (out_features,), jnp.float32, -bound, bound)
    return W, b


if __name__ == "__main__":
    key = jax.random.PRNGKey(0)
    k_a, k_x, k_l1, k_l2 = jax.random.split(key, 4)

    N = 8              # number of graph nodes
    num_features = 32
    num_class = 4
    hidden = 16

    # Synthetic normalized adjacency (dense stand-in for the sparse A).
    adj = (jax.random.uniform(k_a, (N, N)) < 0.4).astype(jnp.float32)
    adj = jnp.maximum(adj, adj.T) + jnp.eye(N, dtype=jnp.float32)
    deg = jnp.sum(adj, axis=1)
    d_inv_sqrt = 1.0 / jnp.sqrt(deg)
    A = adj * d_inv_sqrt[:, None] * d_inv_sqrt[None, :]

    X = jax.random.normal(k_x, (N, num_features), jnp.float32)

    W1, b1 = init_linear(k_l1, num_features, hidden)
    W2, b2 = init_linear(k_l2, hidden, num_class)

    out = gcn_forward(A, X, W1, b1, W2, b2)
    out = jax.block_until_ready(out)

    # Pure-JAX reference of the original (un-reassociated) PyTorch semantics.
    h_ref = jnp.maximum(A @ X @ W1.T + b1, 0.0)
    ref = A @ h_ref @ W2.T + b2
    assert out.shape == (N, num_class)
    assert jnp.allclose(out, ref, atol=1e-4, rtol=1e-4)

    print("KERNEL_OK")
</pallas_src>

<mosaic_0001>
module attributes {stable_mosaic.version = 11 : i64} {
  func.func @gcn_kernel(%arg0: memref<8x8xf32, #tpu.memory_space<vmem>>, %arg1: memref<8x128xf32, #tpu.memory_space<vmem>>, %arg2: memref<128x128xf32, #tpu.memory_space<vmem>>, %arg3: memref<1x128xf32, #tpu.memory_space<vmem>>, %arg4: memref<128x128xf32, #tpu.memory_space<vmem>>, %arg5: memref<1x128xf32, #tpu.memory_space<vmem>>, %arg6: memref<8x128xf32, #tpu.memory_space<vmem>>) attributes {dimension_semantics = [], scalar_prefetch = 0 : i64, scratch_operands = 0 : i64, tpu.core_type = #tpu.core_type<tc>} {
    %c0 = arith.constant 0 : index
    %c0_0 = arith.constant 0 : index
    %0 = vector.load %arg1[%c0, %c0_0] : memref<8x128xf32, #tpu.memory_space<vmem>>, vector<8x128xf32>
    %c0_1 = arith.constant 0 : index
    %c0_2 = arith.constant 0 : index
    %1 = vector.load %arg2[%c0_1, %c0_2] : memref<128x128xf32, #tpu.memory_space<vmem>>, vector<128x128xf32>
    %cst = arith.constant dense<0.000000e+00> : vector<8x128xf32>
    %2 = tpu.matmul %0, %1, %cst {dimension_numbers = #tpu.dot_dimension_numbers<[1], [0], [0], [1], [0, 0, 1, 1], [], []>} : vector<8x128xf32>, vector<128x128xf32>, vector<8x128xf32> -> vector<8x128xf32>
    %c0_3 = arith.constant 0 : index
    %c0_4 = arith.constant 0 : index
    %3 = vector.load %arg0[%c0_3, %c0_4] : memref<8x8xf32, #tpu.memory_space<vmem>>, vector<8x8xf32>
    %cst_5 = arith.constant dense<0.000000e+00> : vector<8x128xf32>
    %4 = tpu.matmul %3, %2, %cst_5 {dimension_numbers = #tpu.dot_dimension_numbers<[1], [0], [0], [1], [0, 0, 1, 1], [], []>} : vector<8x8xf32>, vector<8x128xf32>, vector<8x128xf32> -> vector<8x128xf32>
    %c0_6 = arith.constant 0 : index
    %c0_7 = arith.constant 0 : index
    %5 = vector.load %arg3[%c0_6, %c0_7] : memref<1x128xf32, #tpu.memory_space<vmem>>, vector<1x128xf32>
    %6 = vector.broadcast %5 : vector<1x128xf32> to vector<8x128xf32>
    %7 = arith.addf %4, %6 : vector<8x128xf32>
    %cst_8 = arith.constant 0.000000e+00 : f32
    %8 = vector.broadcast %cst_8 : f32 to vector<8x128xf32>
    %9 = arith.maximumf %7, %8 : vector<8x128xf32>
    %c0_9 = arith.constant 0 : index
    %c0_10 = arith.constant 0 : index
    %10 = vector.load %arg4[%c0_9, %c0_10] : memref<128x128xf32, #tpu.memory_space<vmem>>, vector<128x128xf32>
    %cst_11 = arith.constant dense<0.000000e+00> : vector<8x128xf32>
    %11 = tpu.matmul %9, %10, %cst_11 {dimension_numbers = #tpu.dot_dimension_numbers<[1], [0], [0], [1], [0, 0, 1, 1], [], []>} : vector<8x128xf32>, vector<128x128xf32>, vector<8x128xf32> -> vector<8x128xf32>
    %c0_12 = arith.constant 0 : index
    %c0_13 = arith.constant 0 : index
    %12 = vector.load %arg0[%c0_12, %c0_13] : memref<8x8xf32, #tpu.memory_space<vmem>>, vector<8x8xf32>
    %cst_14 = arith.constant dense<0.000000e+00> : vector<8x128xf32>
    %13 = tpu.matmul %12, %11, %cst_14 {dimension_numbers = #tpu.dot_dimension_numbers<[1], [0], [0], [1], [0, 0, 1, 1], [], []>} : vector<8x8xf32>, vector<8x128xf32>, vector<8x128xf32> -> vector<8x128xf32>
    %c0_15 = arith.constant 0 : index
    %c0_16 = arith.constant 0 : index
    %14 = vector.load %arg5[%c0_15, %c0_16] : memref<1x128xf32, #tpu.memory_space<vmem>>, vector<1x128xf32>
    %15 = vector.broadcast %14 : vector<1x128xf32> to vector<8x128xf32>
    %16 = arith.addf %13, %15 : vector<8x128xf32>
    %c0_17 = arith.constant 0 : index
    %c0_18 = arith.constant 0 : index
    %17 = vector.load %arg6[%c0_17, %c0_18] : memref<8x128xf32, #tpu.memory_space<vmem>>, vector<8x128xf32>
    tpu.vector_store %arg6[%c0_17, %c0_18], %16 {strides = array<i32>} : memref<8x128xf32, #tpu.memory_space<vmem>>, vector<8x128xf32>,
    return
  }
}

</mosaic_0001>

<llo_original>
// kernel: tpu_custom_call.1
$region0: #{tpu_custom_call.1}
  #allocation0 [shape = 'u32[]', space=smem, size = 0x4, offset = 0x4, fixed_abs, tag = 'smem constant byte address 0x4 - core index']
  #allocation1 [shape = 'u32[144,128]{1,0:T(1,128)}', space=vmem, size = 0x12000, scoped, tag = 'internal scratch']
  %s0 = inlined_call_operand.hbm [shape: f32[8,8], index: 0, kind: input, shape index: {}]
  %s1 = inlined_call_operand.hbm [shape: f32[8,128], index: 1, kind: input, shape index: {}]
  %s2 = inlined_call_operand.hbm [shape: f32[128,128], index: 2, kind: input, shape index: {}]
  %s3 = inlined_call_operand.vmem [shape: f32[1,128], index: 3, kind: input, shape index: {}]
  %s4 = inlined_call_operand.hbm [shape: f32[128,128], index: 4, kind: input, shape index: {}]
  %s5 = inlined_call_operand.vmem [shape: f32[1,128], index: 5, kind: input, shape index: {}]
  %s6 = inlined_call_operand.hbm [shape: f32[8,128], index: 6, kind: output, shape index: {}]
  %s7 = sld [smem:[#allocation0]]
  $region50: #{tpu_custom_call.1} parent=0
    _
  %s9 = ssub.s32 1, %s7
  %s10 = scalar_select 0, %s9, %s7
  $region1: #{tpu_custom_call.1} parent=0
    #allocation2 [shape = 'u8[4096]{0}', space=vmem, size = 0x1000, scoped, tag = 'input window, operand 0, single buffered']
    #allocation3 [shape = 's32[1]{0}', space=sflag, size = 0x4, scoped, tag = 'scoped memory for tpu_custom_call.1']
    #allocation4 [shape = 's32[1]{0}', space=sflag, size = 0x4, scoped, tag = 'scoped memory for tpu_custom_call.1']
    #allocation5 [shape = 'u8[4096]{0}', space=vmem, size = 0x1000, scoped, tag = 'input window, operand 1, single buffered']
    #allocation6 [shape = 's32[1]{0}', space=sflag, size = 0x4, scoped, tag = 'scoped memory for tpu_custom_call.1']
    #allocation7 [shape = 'u8[65536]{0}', space=vmem, size = 0x10000, scoped, tag = 'input window, operand 2, single buffered']
    #allocation8 [shape = 'u8[65536]{0}', space=vmem, size = 0x10000, scoped, tag = 'input window, operand 4, single buffered']
    #allocation9 [shape = 's32[1]{0}', space=sflag, size = 0x4, scoped, tag = 'scoped memory for tpu_custom_call.1']
    #allocation10 [shape = 'u8[4096]{0}', space=vmem, size = 0x1000, scoped, tag = 'output window, operand 0, single buffered']
    %11 = vsyncpa [#allocation3], 0
    %12 = vsyncpa [#allocation6], 0
    %13 = vsyncpa [#allocation9], 0
    %14 = vsyncpa [#allocation4], 0
    // Predicated region
    $region2: #{tpu_custom_call.1} parent=1 // pred_check
      _
    $region3: #{tpu_custom_call.1} parent=1 // pred_check_branch
      %16 = sbr.rel (0) target = $region5
    $region4: #{tpu_custom_call.1} parent=1 // pred_region
      %s18 = ssub.s32 128, 128
      %19 = vsyncadd [#allocation3], %s18
      %s21 = sshll.u32 [#allocation2], 4
      %s22 = int_to_ptr.vmem [resolvable:$true] %s21
      %24 = dma.hbm_to_vmem [thread:$0]  %s0, 128, %s22, [#allocation3]
    $region5: #{tpu_custom_call.1} parent=1 // pred_fallthru
      _
    // Predicated region
    $region6: #{tpu_custom_call.1} parent=1 // pred_check
      _
    $region7: #{tpu_custom_call.1} parent=1 // pred_check_branch
      %26 = sbr.rel (0) target = $region9
    $region8: #{tpu_custom_call.1} parent=1 // pred_region
      %s28 = ssub.s32 128, 128
      %29 = vsyncadd [#allocation6], %s28
      %s31 = sshll.u32 [#allocation5], 4
      %s32 = int_to_ptr.vmem [resolvable:$true] %s31
      %34 = dma.hbm_to_vmem [thread:$0]  %s1, 128, %s32, [#allocation6]
    $region9: #{tpu_custom_call.1} parent=1 // pred_fallthru
      _
    // Predicated region
    $region10: #{tpu_custom_call.1} parent=1 // pred_check
      _
    $region11: #{tpu_custom_call.1} parent=1 // pred_check_branch
      %36 = sbr.rel (0) target = $region13
    $region12: #{tpu_custom_call.1} parent=1 // pred_region
      %s38 = ssub.s32 2048, 2048
      %39 = vsyncadd [#allocation6], %s38
      %s40 = sshll.u32 [#allocation7], 4
      %s41 = int_to_ptr.vmem [resolvable:$true] %s40
      %46 = dma.hbm_to_vmem [thread:$0]  %s2, 2048, %s41, [#allocation6], 128, 128, 8
    $region13: #{tpu_custom_call.1} parent=1 // pred_fallthru
      _
    // Predicated region
    $region14: #{tpu_custom_call.1} parent=1 // pred_check
      _
    $region15: #{tpu_custom_call.1} parent=1 // pred_check_branch
      %48 = sbr.rel (0) target = $region17
    $region16: #{tpu_custom_call.1} parent=1 // pred_region
      _
    $region17: #{tpu_custom_call.1} parent=1 // pred_fallthru
      _
    // Predicated region
    $region18: #{tpu_custom_call.1} parent=1 // pred_check
      _
    $region19: #{tpu_custom_call.1} parent=1 // pred_check_branch
      %50 = sbr.rel (0) target = $region21
    $region20: #{tpu_custom_call.1} parent=1 // pred_region
      %s52 = ssub.s32 2048, 2048
      %53 = vsyncadd [#allocation9], %s52
      %s54 = sshll.u32 [#allocation8], 4
      %s55 = int_to_ptr.vmem [resolvable:$true] %s54
      %60 = dma.hbm_to_vmem [thread:$0]  %s4, 2048, %s55, [#allocation9], 128, 128, 8
    $region21: #{tpu_custom_call.1} parent=1 // pred_fallthru
      _
    // Predicated region
    $region22: #{tpu_custom_call.1} parent=1 // pred_check
      _
    $region23: #{tpu_custom_call.1} parent=1 // pred_check_branch
      %62 = sbr.rel (0) target = $region25
    $region24: #{tpu_custom_call.1} parent=1 // pred_region
      _
    $region25: #{tpu_custom_call.1} parent=1 // pred_fallthru
      _
    // Predicated region
    $region26: #{tpu_custom_call.1} parent=1 // pred_check
      _
    $region27: #{tpu_custom_call.1} parent=1 // pred_check_branch
      %64 = sbr.rel (0) target = $region29
    $region28: #{tpu_custom_call.1} parent=1 // pred_region
      %65 = dma.done [#allocation3], 128
    $region29: #{tpu_custom_call.1} parent=1 // pred_fallthru
      _
    // Predicated region
    $region30: #{tpu_custom_call.1} parent=1 // pred_check
      _
    $region31: #{tpu_custom_call.1} parent=1 // pred_check_branch
      %67 = sbr.rel (0) target = $region33
    $region32: #{tpu_custom_call.1} parent=1 // pred_region
      %68 = dma.done [#allocation6], 128
    $region33: #{tpu_custom_call.1} parent=1 // pred_fallthru
      _
    // Predicated region
    $region34: #{tpu_custom_call.1} parent=1 // pred_check
      _
    $region35: #{tpu_custom_call.1} parent=1 // pred_check_branch
      %70 = sbr.rel (0) target = $region37
    $region36: #{tpu_custom_call.1} parent=1 // pred_region
      %71 = dma.done [#allocation6], 2048
    $region37: #{tpu_custom_call.1} parent=1 // pred_fallthru
      _
    // Predicated region
    $region38: #{tpu_custom_call.1} parent=1 // pred_check
      _
    $region39: #{tpu_custom_call.1} parent=1 // pred_check_branch
      %73 = sbr.rel (0) target = $region41
    $region40: #{tpu_custom_call.1} parent=1 // pred_region
      %74 = dma.done [#allocation9], 2048
    $region41: #{tpu_custom_call.1} parent=1 // pred_fallthru
      _
    %v75 = vld [vmem:[#allocation5] sm:$0xff]
    %v76 = vld [vmem:[#allocation7] sm:$0xff]
    %v77 = vld [vmem:[#allocation7 + $0x8] sm:$0xff]
    %v78 = vld [vmem:[#allocation7 + $0x10] sm:$0xff]
    %v79 = vld [vmem:[#allocation7 + $0x18] sm:$0xff]
    %v80 = vld [vmem:[#allocation7 + $0x20] sm:$0xff]
    %v81 = vld [vmem:[#allocation7 + $0x28] sm:$0xff]
    %v82 = vld [vmem:[#allocation7 + $0x30] sm:$0xff]
    %v83 = vld [vmem:[#allocation7 + $0x38] sm:$0xff]
    %v84 = vld [vmem:[#allocation7 + $0x40] sm:$0xff]
    %v85 = vld [vmem:[#allocation7 + $0x48] sm:$0xff]
    %v86 = vld [vmem:[#allocation7 + $0x50] sm:$0xff]
    %v87 = vld [vmem:[#allocation7 + $0x58] sm:$0xff]
    %v88 = vld [vmem:[#allocation7 + $0x60] sm:$0xff]
    %v89 = vld [vmem:[#allocation7 + $0x68] sm:$0xff]
    %v90 = vld [vmem:[#allocation7 + $0x70] sm:$0xff]
    %v91 = vld [vmem:[#allocation7 + $0x78] sm:$0xff]
    %92 = vmatprep.subr.mxu0 0.0
    %93 = vmatpush1.msra.mxu0 %v76
    %94 = vmatprep.subr.mxu0 0.0
    %95 = vmatpush1.msra.mxu0 %v77
    %96 = vmatprep.subr.mxu0 0.0
    %97 = vmatpush1.msra.mxu0 %v78
    %98 = vmatprep.subr.mxu0 0.0
    %99 = vmatpush1.msra.mxu0 %v79
    %100 = vmatprep.subr.mxu0 0.0
    %101 = vmatpush1.msra.mxu0 %v80
    %102 = vmatprep.subr.mxu0 0.0
    %103 = vmatpush1.msra.mxu0 %v81
    %104 = vmatprep.subr.mxu0 0.0
    %105 = vmatpush1.msra.mxu0 %v82
    %106 = vmatprep.subr.mxu0 0.0
    %107 = vmatpush1.msra.mxu0 %v83
    %108 = vmatprep.subr.mxu0 0.0
    %109 = vmatpush1.msra.mxu0 %v84
    %110 = vmatprep.subr.mxu0 0.0
    %111 = vmatpush1.msra.mxu0 %v85
    %112 = vmatprep.subr.mxu0 0.0
    %113 = vmatpush1.msra.mxu0 %v86
    %114 = vmatprep.subr.mxu0 0.0
    %115 = vmatpush1.msra.mxu0 %v87
    %116 = vmatprep.subr.mxu0 0.0
    %117 = vmatpush1.msra.mxu0 %v88
    %118 = vmatprep.subr.mxu0 0.0
    %119 = vmatpush1.msra.mxu0 %v89
    %120 = vmatprep.subr.mxu0 0.0
    %121 = vmatpush1.msra.mxu0 %v90
    %122 = vmatprep.subr.mxu0 0.0
    %123 = vmatpush1.msra.mxu0 %v91
    %124 = vmatprep.subr.mxu0 0.0
    %125 = vmatpush1.msra.mxu0 0.0
    %126 = vmatprep.subr.mxu0 0.0
    %127 = vmatpush1.msra.mxu0 0.0
    %128 = vmatprep.subr.mxu0 0.0
    %129 = vmatpush1.msra.mxu0 0.0
    %130 = vmatprep.subr.mxu0 0.0
    %131 = vmatpush1.msra.mxu0 0.0
    %132 = vmatprep.subr.mxu0 0.0
    %133 = vmatpush1.msra.mxu0 0.0
    %134 = vmatprep.subr.mxu0 0.0
    %135 = vmatpush1.msra.mxu0 0.0
    %136 = vmatprep.subr.mxu0 0.0
    %137 = vmatpush1.msra.mxu0 0.0
    %138 = vmatprep.subr.mxu0 0.0
    %139 = vmatpush1.msra.mxu0 0.0
    %140 = vmatprep.subr.mxu0 0.0
    %141 = vmatpush1.msra.mxu0 0.0
    %142 = vmatprep.subr.mxu0 0.0
    %143 = vmatpush1.msra.mxu0 0.0
    %144 = vmatprep.subr.mxu0 0.0
    %145 = vmatpush1.msra.mxu0 0.0
    %146 = vmatprep.subr.mxu0 0.0
    %147 = vmatpush1.msra.mxu0 0.0
    %148 = vmatprep.subr.mxu0 0.0
    %149 = vmatpush1.msra.mxu0 0.0
    %150 = vmatprep.subr.mxu0 0.0
    %151 = vmatpush1.msra.mxu0 0.0
    %152 = vmatprep.subr.mxu0 0.0
    %153 = vmatpush1.msra.mxu0 0.0
    %154 = vmatprep.subr.mxu0 0.0
    %155 = vmatpush1.msra.mxu0 0.0
    %156 = vmatprep.mubr.f32.mxu0 0.0
    %157 = vmatmul.mubr.f32.gmra.mrb[0].mxu0 %v75
    %v158 = vpop.f32.mrb[0].mxu0
    %v159 = vadd.f32 0.0, %v158
    %v160 = vpop.f32.mrb[0].mxu0
    %161 = vdwg.mxu0
    %v162 = vld [vmem:[#allocation2] sm:$0xff]
    %v163 = vld [vmem:[%s3] sm:$0x1]
    %v165 = vlaneseq
    %v166 = vshrl.u32 %v165, 7
    %v167 = vsub.s32 0, %v166
    %v168 = vrot.slane %v163, %v167
    %vm170 = vcmask 64512
    %v172 = vsel %vm170, %v162, 0
    %174 = vmatprep.subr.mxu0 0.0
    %175 = vmatpush1.msra.mxu0 %v159
    %176 = vmatprep.subr.mxu0 0.0
    %177 = vmatpush1.msra.mxu0 0.0
    %178 = vmatprep.subr.mxu0 0.0
    %179 = vmatpush1.msra.mxu0 0.0
    %180 = vmatprep.subr.mxu0 0.0
    %181 = vmatpush1.msra.mxu0 0.0
    %182 = vmatprep.subr.mxu0 0.0
    %183 = vmatpush1.msra.mxu0 0.0
    %184 = vmatprep.subr.mxu0 0.0
    %185 = vmatpush1.msra.mxu0 0.0
    %186 = vmatprep.subr.mxu0 0.0
    %187 = vmatpush1.msra.mxu0 0.0
    %188 = vmatprep.subr.mxu0 0.0
    %189 = vmatpush1.msra.mxu0 0.0
    %190 = vmatprep.subr.mxu0 0.0
    %191 = vmatpush1.msra.mxu0 0.0
    %192 = vmatprep.subr.mxu0 0.0
    %193 = vmatpush1.msra.mxu0 0.0
    %194 = vmatprep.subr.mxu0 0.0
    %195 = vmatpush1.msra.mxu0 0.0
    %196 = vmatprep.subr.mxu0 0.0
    %197 = vmatpush1.msra.mxu0 0.0
    %198 = vmatprep.subr.mxu0 0.0
    %199 = vmatpush1.msra.mxu0 0.0
    %200 = vmatprep.subr.mxu0 0.0
    %201 = vmatpush1.msra.mxu0 0.0
    %202 = vmatprep.subr.mxu0 0.0
    %203 = vmatpush1.msra.mxu0 0.0
    %204 = vmatprep.subr.mxu0 0.0
    %205 = vmatpush1.msra.mxu0 0.0
    %206 = vmatprep.subr.mxu0 0.0
    %207 = vmatpush1.msra.mxu0 0.0
    %208 = vmatprep.subr.mxu0 0.0
    %209 = vmatpush1.msra.mxu0 0.0
    %210 = vmatprep.subr.mxu0 0.0
    %211 = vmatpush1.msra.mxu0 0.0
    %212 = vmatprep.subr.mxu0 0.0
    %213 = vmatpush1.msra.mxu0 0.0
    %214 = vmatprep.subr.mxu0 0.0
    %215 = vmatpush1.msra.mxu0 0.0
    %216 = vmatprep.subr.mxu0 0.0
    %217 = vmatpush1.msra.mxu0 0.0
    %218 = vmatprep.subr.mxu0 0.0
    %219 = vmatpush1.msra.mxu0 0.0
    %220 = vmatprep.subr.mxu0 0.0
    %221 = vmatpush1.msra.mxu0 0.0
    %222 = vmatprep.subr.mxu0 0.0
    %223 = vmatpush1.msra.mxu0 0.0
    %224 = vmatprep.subr.mxu0 0.0
    %225 = vmatpush1.msra.mxu0 0.0
    %226 = vmatprep.subr.mxu0 0.0
    %227 = vmatpush1.msra.mxu0 0.0
    %228 = vmatprep.subr.mxu0 0.0
    %229 = vmatpush1.msra.mxu0 0.0
    %230 = vmatprep.subr.mxu0 0.0
    %231 = vmatpush1.msra.mxu0 0.0
    %232 = vmatprep.subr.mxu0 0.0
    %233 = vmatpush1.msra.mxu0 0.0
    %234 = vmatprep.subr.mxu0 0.0
    %235 = vmatpush1.msra.mxu0 0.0
    %236 = vmatprep.subr.mxu0 0.0
    %237 = vmatpush1.msra.mxu0 0.0
    %238 = vmatprep.mubr.f32.mxu0 0.0
    %239 = vmatmul.mubr.f32.gmra.mrb[0].mxu0 %v172
    %v240 = vpop.f32.mrb[0].mxu0
    %v241 = vadd.f32 %v168, %v240
    %v242 = vpop.f32.mrb[0].mxu0
    %243 = vdwg.mxu0
    %v244 = vmax.f32 %v241, 0.0
    %v245 = vld [vmem:[#allocation8] sm:$0xff]
    %v246 = vld [vmem:[#allocation8 + $0x8] sm:$0xff]
    %v247 = vld [vmem:[#allocation8 + $0x10] sm:$0xff]
    %v248 = vld [vmem:[#allocation8 + $0x18] sm:$0xff]
    %v249 = vld [vmem:[#allocation8 + $0x20] sm:$0xff]
    %v250 = vld [vmem:[#allocation8 + $0x28] sm:$0xff]
    %v251 = vld [vmem:[#allocation8 + $0x30] sm:$0xff]
    %v252 = vld [vmem:[#allocation8 + $0x38] sm:$0xff]
    %v253 = vld [vmem:[#allocation8 + $0x40] sm:$0xff]
    %v254 = vld [vmem:[#allocation8 + $0x48] sm:$0xff]
    %v255 = vld [vmem:[#allocation8 + $0x50] sm:$0xff]
    %v256 = vld [vmem:[#allocation8 + $0x58] sm:$0xff]
    %v257 = vld [vmem:[#allocation8 + $0x60] sm:$0xff]
    %v258 = vld [vmem:[#allocation8 + $0x68] sm:$0xff]
    %v259 = vld [vmem:[#allocation8 + $0x70] sm:$0xff]
    %v260 = vld [vmem:[#allocation8 + $0x78] sm:$0xff]
    %261 = vmatprep.subr.mxu0 0.0
    %262 = vmatpush1.msra.mxu0 %v245
    %263 = vmatprep.subr.mxu0 0.0
    %264 = vmatpush1.msra.mxu0 %v246
    %265 = vmatprep.subr.mxu0 0.0
    %266 = vmatpush1.msra.mxu0 %v247
    %267 = vmatprep.subr.mxu0 0.0
    %268 = vmatpush1.msra.mxu0 %v248
    %269 = vmatprep.subr.mxu0 0.0
    %270 = vmatpush1.msra.mxu0 %v249
    %271 = vmatprep.subr.mxu0 0.0
    %272 = vmatpush1.msra.mxu0 %v250
    %273 = vmatprep.subr.mxu0 0.0
    %274 = vmatpush1.msra.mxu0 %v251
    %275 = vmatprep.subr.mxu0 0.0
    %276 = vmatpush1.msra.mxu0 %v252
    %277 = vmatprep.subr.mxu0 0.0
    %278 = vmatpush1.msra.mxu0 %v253
    %279 = vmatprep.subr.mxu0 0.0
    %280 = vmatpush1.msra.mxu0 %v254
    %281 = vmatprep.subr.mxu0 0.0
    %282 = vmatpush1.msra.mxu0 %v255
    %283 = vmatprep.subr.mxu0 0.0
    %284 = vmatpush1.msra.mxu0 %v256
    %285 = vmatprep.subr.mxu0 0.0
    %286 = vmatpush1.msra.mxu0 %v257
    %287 = vmatprep.subr.mxu0 0.0
    %288 = vmatpush1.msra.mxu0 %v258
    %289 = vmatprep.subr.mxu0 0.0
    %290 = vmatpush1.msra.mxu0 %v259
    %291 = vmatprep.subr.mxu0 0.0
    %292 = vmatpush1.msra.mxu0 %v260
    %293 = vmatprep.subr.mxu0 0.0
    %294 = vmatpush1.msra.mxu0 0.0
    %295 = vmatprep.subr.mxu0 0.0
    %296 = vmatpush1.msra.mxu0 0.0
    %297 = vmatprep.subr.mxu0 0.0
    %298 = vmatpush1.msra.mxu0 0.0
    %299 = vmatprep.subr.mxu0 0.0
    %300 = vmatpush1.msra.mxu0 0.0
    %301 = vmatprep.subr.mxu0 0.0
    %302 = vmatpush1.msra.mxu0 0.0
    %303 = vmatprep.subr.mxu0 0.0
    %304 = vmatpush1.msra.mxu0 0.0
    %305 = vmatprep.subr.mxu0 0.0
    %306 = vmatpush1.msra.mxu0 0.0
    %307 = vmatprep.subr.mxu0 0.0
    %308 = vmatpush1.msra.mxu0 0.0
    %309 = vmatprep.subr.mxu0 0.0
    %310 = vmatpush1.msra.mxu0 0.0
    %311 = vmatprep.subr.mxu0 0.0
    %312 = vmatpush1.msra.mxu0 0.0
    %313 = vmatprep.subr.mxu0 0.0
    %314 = vmatpush1.msra.mxu0 0.0
    %315 = vmatprep.subr.mxu0 0.0
    %316 = vmatpush1.msra.mxu0 0.0
    %317 = vmatprep.subr.mxu0 0.0
    %318 = vmatpush1.msra.mxu0 0.0
    %319 = vmatprep.subr.mxu0 0.0
    %320 = vmatpush1.msra.mxu0 0.0
    %321 = vmatprep.subr.mxu0 0.0
    %322 = vmatpush1.msra.mxu0 0.0
    %323 = vmatprep.subr.mxu0 0.0
    %324 = vmatpush1.msra.mxu0 0.0
    %325 = vmatprep.mubr.f32.mxu0 0.0
    %326 = vmatmul.mubr.f32.gmra.mrb[0].mxu0 %v244
    %v327 = vpop.f32.mrb[0].mxu0
    %v328 = vadd.f32 0.0, %v327
    %v329 = vpop.f32.mrb[0].mxu0
    %330 = vdwg.mxu0
    %v331 = vld [vmem:[%s5] sm:$0x1]
    %v333 = vlaneseq
    %v334 = vshrl.u32 %v333, 7
    %v335 = vsub.s32 0, %v334
    %v336 = vrot.slane %v331, %v335
    %338 = vmatprep.subr.mxu0 0.0
    %339 = vmatpush1.msra.mxu0 %v328
    %340 = vmatprep.subr.mxu0 0.0
    %341 = vmatpush1.msra.mxu0 0.0
    %342 = vmatprep.subr.mxu0 0.0
    %343 = vmatpush1.msra.mxu0 0.0
    %344 = vmatprep.subr.mxu0 0.0
    %345 = vmatpush1.msra.mxu0 0.0
    %346 = vmatprep.subr.mxu0 0.0
    %347 = vmatpush1.msra.mxu0 0.0
    %348 = vmatprep.subr.mxu0 0.0
    %349 = vmatpush1.msra.mxu0 0.0
    %350 = vmatprep.subr.mxu0 0.0
    %351 = vmatpush1.msra.mxu0 0.0
    %352 = vmatprep.subr.mxu0 0.0
    %353 = vmatpush1.msra.mxu0 0.0
    %354 = vmatprep.subr.mxu0 0.0
    %355 = vmatpush1.msra.mxu0 0.0
    %356 = vmatprep.subr.mxu0 0.0
    %357 = vmatpush1.msra.mxu0 0.0
    %358 = vmatprep.subr.mxu0 0.0
    %359 = vmatpush1.msra.mxu0 0.0
    %360 = vmatprep.subr.mxu0 0.0
    %361 = vmatpush1.msra.mxu0 0.0
    %362 = vmatprep.subr.mxu0 0.0
    %363 = vmatpush1.msra.mxu0 0.0
    %364 = vmatprep.subr.mxu0 0.0
    %365 = vmatpush1.msra.mxu0 0.0
    %366 = vmatprep.subr.mxu0 0.0
    %367 = vmatpush1.msra.mxu0 0.0
    %368 = vmatprep.subr.mxu0 0.0
    %369 = vmatpush1.msra.mxu0 0.0
    %370 = vmatprep.subr.mxu0 0.0
    %371 = vmatpush1.msra.mxu0 0.0
    %372 = vmatprep.subr.mxu0 0.0
    %373 = vmatpush1.msra.mxu0 0.0
    %374 = vmatprep.subr.mxu0 0.0
    %375 = vmatpush1.msra.mxu0 0.0
    %376 = vmatprep.subr.mxu0 0.0
    %377 = vmatpush1.msra.mxu0 0.0
    %378 = vmatprep.subr.mxu0 0.0
    %379 = vmatpush1.msra.mxu0 0.0
    %380 = vmatprep.subr.mxu0 0.0
    %381 = vmatpush1.msra.mxu0 0.0
    %382 = vmatprep.subr.mxu0 0.0
    %383 = vmatpush1.msra.mxu0 0.0
    %384 = vmatprep.subr.mxu0 0.0
    %385 = vmatpush1.msra.mxu0 0.0
    %386 = vmatprep.subr.mxu0 0.0
    %387 = vmatpush1.msra.mxu0 0.0
    %388 = vmatprep.subr.mxu0 0.0
    %389 = vmatpush1.msra.mxu0 0.0
    %390 = vmatprep.subr.mxu0 0.0
    %391 = vmatpush1.msra.mxu0 0.0
    %392 = vmatprep.subr.mxu0 0.0
    %393 = vmatpush1.msra.mxu0 0.0
    %394 = vmatprep.subr.mxu0 0.0
    %395 = vmatpush1.msra.mxu0 0.0
    %396 = vmatprep.subr.mxu0 0.0
    %397 = vmatpush1.msra.mxu0 0.0
    %398 = vmatprep.subr.mxu0 0.0
    %399 = vmatpush1.msra.mxu0 0.0
    %400 = vmatprep.subr.mxu0 0.0
    %401 = vmatpush1.msra.mxu0 0.0
    %402 = vmatprep.mubr.f32.mxu0 0.0
    %403 = vmatmul.mubr.f32.gmra.mrb[0].mxu0 %v172
    %v404 = vpop.f32.mrb[0].mxu0
    %v405 = vadd.f32 %v336, %v404
    %v406 = vpop.f32.mrb[0].mxu0
    %407 = vdwg.mxu0
    %408 = vst [vmem:[#allocation10] sm:$0xff] %v405
    // Predicated region
    $region42: #{tpu_custom_call.1} parent=1 // pred_check
      _
    $region43: #{tpu_custom_call.1} parent=1 // pred_check_branch
      %410 = sbr.rel (0) target = $region45
    $region44: #{tpu_custom_call.1} parent=1 // pred_region
      %s412 = ssub.s32 128, 128
      %413 = vsyncadd [#allocation4], %s412
      %s415 = sshll.u32 [#allocation10], 4
      %s416 = int_to_ptr.vmem [resolvable:$true] %s415
      %418 = dma.vmem_to_hbm [thread:$0]  %s416, 128, %s6, [#allocation4]
    $region45: #{tpu_custom_call.1} parent=1 // pred_fallthru
      _
    // Predicated region
    $region46: #{tpu_custom_call.1} parent=1 // pred_check
      _
    $region47: #{tpu_custom_call.1} parent=1 // pred_check_branch
      %420 = sbr.rel (0) target = $region49
    $region48: #{tpu_custom_call.1} parent=1 // pred_region
      %421 = dma.done [#allocation4], 128
    $region49: #{tpu_custom_call.1} parent=1 // pred_fallthru
      _
    %422 = vsyncpa [#allocation3], 1
    %423 = vsyncpa [#allocation6], 1
    %424 = vsyncpa [#allocation9], 1
    %425 = vsyncpa [#allocation4], 1

</llo_original>
